<compile_context>
chip_gen: v7x
topology: tpu7x:2x2x1
jax: 0.10.0
libtpu: 0.0.40
codegen_flags: <defaults>
</compile_context>

<pallas_src>
import functools

import jax
import jax.numpy as jnp
from jax.experimental import pallas as pl
from jax.experimental.pallas import tpu as pltpu


# ---------------------------------------------------------------------------
# Pallas kernel: lane-dense matmul with bias (the conv hot path after im2col)
#   w_ref:    (O, K)   bf16   (full block, constant across the grid)
#   a_ref:    (K, tm)  bf16   (one M-tile of the K-major patch matrix)
#   bias_ref: (O, 1)   f32
#   o_ref:    (O, tm)  bf16   (M on lanes -> unmasked, lane-dense stores)
# ---------------------------------------------------------------------------
def _conv_matmul_kernel(w_ref, a_ref, bias_ref, o_ref):
    acc = jnp.dot(w_ref[...], a_ref[...], preferred_element_type=jnp.float32)
    # Bias add in f32 (free VALU slack, no bf16-ALU emulation on v5e);
    # single cast at the store.
    o_ref[...] = (acc + bias_ref[...]).astype(o_ref.dtype)


def _round_up(x, m):
    return (x + m - 1) // m * m


@functools.lru_cache(maxsize=None)
def _num_tensorcores():
    """TensorCores per chip: 2 on v7x, 1 on v5e/v6e. Fallback 1 is safe."""
    try:
        return max(1, int(getattr(jax.devices()[0], "num_cores", 1) or 1))
    except Exception:  # pragma: no cover - defensive
        return 1


def _choose_tm(mp, k_dim, o_dim, num_cores, vmem_budget=24 * 1024 * 1024):
    """Pick a lane-aligned M tile size that divides mp.

    Single tile on single-TC parts (avoids ~0.35us/step grid overhead on a
    sub-microsecond kernel); >=2 tiles only on multi-TC parts (v7x) so both
    TensorCores get work, sized against an explicit VMEM budget (v7x has only
    64 MiB VMEM / 32 MiB default scoped limit).
    """
    def tile_bytes(tm):
        return (2 * tm * k_dim * 2          # patch tile, bf16, double-buffered
                + 2 * o_dim * tm * 2        # output tile, bf16, double-buffered
                + o_dim * k_dim * 2         # weights, bf16
                + o_dim * 4)                # bias, f32

    cands = [t for t in range(mp, 127, -128) if mp % t == 0]
    if num_cores > 1:
        multi = [t for t in cands if mp // t >= 2 and tile_bytes(t) <= vmem_budget]
        if multi:
            return multi[0]
    fits = [t for t in cands if tile_bytes(t) <= vmem_budget]
    return fits[0] if fits else 128


@functools.partial(jax.jit, static_argnames=("tm",))
def _matmul_bias_lanedense(w, a, bias, *, tm):
    """Returns (O, Mp) bf16 = cast(w @ a + bias), with M lane-dense."""
    o_dim, k_dim = w.shape
    _, mp = a.shape
    grid_m = mp // tm
    cost = pl.CostEstimate(
        flops=2 * o_dim * k_dim * mp,
        transcendentals=0,
        bytes_accessed=(k_dim * mp * 2 + o_dim * k_dim * 2
                        + o_dim * 4 + o_dim * mp * 2))
    # NOTE: weight/bias blocks are grid-constant; Pallas skips re-DMA for an
    # unchanged block index, so pipeline_mode=pl.Buffered(1) would only save a
    # few KB of VMEM here and is omitted to keep lowering risk at zero.
    return pl.pallas_call(
        _conv_matmul_kernel,
        out_shape=jax.ShapeDtypeStruct((o_dim, mp), jnp.bfloat16),
        grid_spec=pltpu.PrefetchScalarGridSpec(
            num_scalar_prefetch=0,
            grid=(grid_m,),
            in_specs=[
                pl.BlockSpec((o_dim, k_dim), lambda i: (0, 0)),  # weights
                pl.BlockSpec((k_dim, tm), lambda i: (0, i)),     # patches (K-major)
                pl.BlockSpec((o_dim, 1), lambda i: (0, 0)),      # bias
            ],
            out_specs=pl.BlockSpec((o_dim, tm), lambda i: (0, i)),
        ),
        compiler_params=pltpu.CompilerParams(
            dimension_semantics=("parallel",),
            vmem_limit_bytes=32 * 1024 * 1024),
        cost_estimate=cost,
    )(w, a, bias)


# ---------------------------------------------------------------------------
# Conv2d forward (CNHW activations) via K-major im2col + Pallas matmul
# ---------------------------------------------------------------------------
def conv2d_cnhw_pallas(x_cnhw, weight, bias, stride, padding):
    """x: (C, N, H, W); weight: (O, C, kH, kW) [PyTorch layout]; bias: (O,).

    Returns (O, N, OH, OW) in bf16 — already the CNHW layout the next conv's
    im2col wants, so no inter-layer transpose is needed.
    """
    c, n, h, w = x_cnhw.shape
    o, cw, kh_dim, kw_dim = weight.shape
    if cw != c:
        # TODO(synk): groups > 1 (grouped/depthwise conv) not lowered.
        raise NotImplementedError("grouped conv (groups > 1) is not lowered")
    oh = (h + 2 * padding - kh_dim) // stride + 1
    ow = (w + 2 * padding - kw_dim) // stride + 1

    x_pad = jnp.pad(x_cnhw, ((0, 0), (0, 0),
                             (padding, padding), (padding, padding)))

    # K-major im2col: each tap slice is (C, N, OH, OW); stacking taps on axis 1
    # gives K ordered (c, kh, kw), which matches weight.reshape(O, C*kH*kW)
    # directly.  The flattening reshape needs no transpose anywhere.
    taps = []
    for kh in range(kh_dim):
        for kw in range(kw_dim):
            taps.append(x_pad[:, :, kh:kh + (oh - 1) * stride + 1:stride,
                              kw:kw + (ow - 1) * stride + 1:stride])
    k = c * kh_dim * kw_dim
    m = n * oh * ow
    a = jnp.stack(taps, axis=1).reshape(k, m)        # (K, M), K-major

    w_mat = weight.reshape(o, k)                     # (O, K), no transpose

    mp = _round_up(m, 128)
    if mp != m:
        a = jnp.pad(a, ((0, 0), (0, mp - m)))
    tm = _choose_tm(mp, k, o, _num_tensorcores())

    out = _matmul_bias_lanedense(
        w_mat.astype(jnp.bfloat16),
        a.astype(jnp.bfloat16),
        bias.astype(jnp.float32).reshape(o, 1),
        tm=tm)                                       # (O, Mp), bf16

    return out[:, :m].reshape(o, n, oh, ow)


def make_model_forward(conv_layers):
    """Builds a jitted forward for the tiny conv 'model' (all layers fused
    under one jit: one NCHW->CNHW transpose at the top, no other transposes)."""
    strides = tuple(l["stride"] for l in conv_layers)
    paddings = tuple(l["padding"] for l in conv_layers)
    for l in conv_layers:
        if l["groups"] != 1:
            # TODO(synk): groups > 1 (grouped/depthwise conv) not lowered.
            raise NotImplementedError("grouped conv (groups > 1) is not lowered")

    @jax.jit
    def fwd(x_nchw, params):
        h = jnp.transpose(x_nchw, (1, 0, 2, 3))       # NCHW -> CNHW once
        outs = []
        for (wt, b), s, p in zip(params, strides, paddings):
            h = conv2d_cnhw_pallas(h, wt, b, s, p)    # (O, N, OH, OW) bf16
            outs.append(h)
        return outs

    return fwd


# ---------------------------------------------------------------------------
# ProfileConv equivalent
# ---------------------------------------------------------------------------
def profile_conv_macs(x_shape, conv_layers):
    """Per-Conv2d MAC counts, exactly the hook formula:
         out_C * out_H * out_W * kW * kW * in_C / groups
    (NOTE: mirrors the PyTorch hook verbatim, incl. kW*kW for non-square
    kernels.)  MACs depend only on static shapes, so no device work is done.
    """
    n, c, h, w = x_shape
    macs = []
    for layer in conv_layers:
        o, _, kh_dim, kw_dim = layer["weight"].shape
        s, p, g = layer["stride"], layer["padding"], layer["groups"]
        oh = (h + 2 * p - kh_dim) // s + 1
        ow = (w + 2 * p - kw_dim) // s + 1
        macs.append(o * oh * ow * kw_dim * kw_dim * c / g)
        c, h, w = o, oh, ow
    return macs


def profile_conv(x_nchw, conv_layers, *, run_model=False):
    """ProfileConv.forward equivalent: returns the MAC list.

    The original does `_ = self.model(x)` and discards the output; the hook
    reads only shapes (static here), so by default no device compute is
    launched (perf review).  Set run_model=True to also execute the Pallas
    forward, mirroring the original literally (output still discarded).
    """
    if run_model:
        fwd = make_model_forward(conv_layers)
        _ = fwd(x_nchw, [(l["weight"], l["bias"]) for l in conv_layers])
    return profile_conv_macs(x_nchw.shape, conv_layers)


if __name__ == "__main__":
    key = jax.random.PRNGKey(0)
    k_x, k_w1, k_b1, k_w2, k_b2 = jax.random.split(key, 5)

    # Input (NCHW, matching the PyTorch module), small shapes.
    x = jax.random.normal(k_x, (2, 4, 16, 16), dtype=jnp.float32)

    # Deterministic "model": two plain Conv2d layers (both get hooked).
    conv_layers = [
        dict(weight=0.1 * jax.random.normal(k_w1, (8, 4, 3, 3), jnp.float32),
             bias=0.1 * jax.random.normal(k_b1, (8,), jnp.float32),
             stride=1, padding=1, groups=1),
        dict(weight=0.1 * jax.random.normal(k_w2, (16, 8, 3, 3), jnp.float32),
             bias=0.1 * jax.random.normal(k_b2, (16,), jnp.float32),
             stride=2, padding=1, groups=1),
    ]

    # Run the Pallas forward once and block on it (exercises the kernel).
    fwd = make_model_forward(conv_layers)
    params = [(l["weight"], l["bias"]) for l in conv_layers]
    outs = fwd(x, params)
    jax.block_until_ready(outs)

    # Numerical sanity check vs XLA conv (bf16 matmul/out -> loose tolerance).
    def lax_conv(inp, layer):
        r = jax.lax.conv_general_dilated(
            inp, layer["weight"],
            window_strides=(layer["stride"],) * 2,
            padding=((layer["padding"],) * 2,) * 2,
            dimension_numbers=("NCHW", "OIHW", "NCHW"))
        return r + layer["bias"][None, :, None, None]

    got1 = jnp.transpose(outs[0], (1, 0, 2, 3)).astype(jnp.float32)  # NCHW
    ref1 = lax_conv(x, conv_layers[0])
    err1 = float(jnp.max(jnp.abs(got1 - ref1)))
    assert err1 < 5e-2, f"conv1 mismatch, max abs err = {err1}"

    got2 = jnp.transpose(outs[1], (1, 0, 2, 3)).astype(jnp.float32)
    ref2 = lax_conv(got1, conv_layers[1])   # isolate layer-2 kernel error
    err2 = float(jnp.max(jnp.abs(got2 - ref2)))
    assert err2 < 5e-2, f"conv2 mismatch, max abs err = {err2}"

    # ProfileConv: MAC list (static shapes only; model output is discarded).
    macs = profile_conv(x, conv_layers)
    # Expected (hook formula):
    #   conv1 = 8*16*16*3*3*4 = 73728 ; conv2 = 16*8*8*3*3*8 = 73728
    expected = [8 * 16 * 16 * 3 * 3 * 4 / 1, 16 * 8 * 8 * 3 * 3 * 8 / 1]
    assert macs == expected, (macs, expected)

    print("KERNEL_OK")
</pallas_src>

<mosaic_0001>
module attributes {stable_mosaic.version = 11 : i64} {
  func.func @_conv_matmul_kernel(%arg0: i32, %arg1: memref<8x36xbf16, #tpu.memory_space<vmem>>, %arg2: memref<36x512xbf16, #tpu.memory_space<vmem>>, %arg3: memref<8x1xf32, #tpu.memory_space<vmem>>, %arg4: memref<8x512xbf16, #tpu.memory_space<vmem>>) attributes {dimension_semantics = [#tpu.dimension_semantics<parallel>], iteration_bounds = array<i64: 1>, scalar_prefetch = 0 : i64, scratch_operands = 0 : i64, tpu.core_type = #tpu.core_type<tc>, window_params = [{pipeline_mode = #tpu.pipeline_mode<synchronous>, transform_indices = @transform_0, window_bounds = array<i64: 8, 36>}, {transform_indices = @transform_1, window_bounds = array<i64: 36, 512>}, {pipeline_mode = #tpu.pipeline_mode<synchronous>, transform_indices = @transform_2, window_bounds = array<i64: 8, 1>}, {transform_indices = @transform_3, window_bounds = array<i64: 8, 512>}]} {
    %c0 = arith.constant 0 : index
    %c0_0 = arith.constant 0 : index
    %0 = vector.load %arg1[%c0, %c0_0] : memref<8x36xbf16, #tpu.memory_space<vmem>>, vector<8x36xbf16>
    %c0_1 = arith.constant 0 : index
    %c0_2 = arith.constant 0 : index
    %1 = vector.load %arg2[%c0_1, %c0_2] : memref<36x512xbf16, #tpu.memory_space<vmem>>, vector<36x512xbf16>
    %cst = arith.constant dense<0.000000e+00> : vector<8x512xf32>
    %2 = tpu.matmul %0, %1, %cst {dimension_numbers = #tpu.dot_dimension_numbers<[1], [0], [0], [1], [0, 0, 1, 1], [], []>} : vector<8x36xbf16>, vector<36x512xbf16>, vector<8x512xf32> -> vector<8x512xf32>
    %c0_3 = arith.constant 0 : index
    %c0_4 = arith.constant 0 : index
    %3 = vector.load %arg3[%c0_3, %c0_4] : memref<8x1xf32, #tpu.memory_space<vmem>>, vector<8x1xf32>
    %4 = vector.broadcast %3 : vector<8x1xf32> to vector<8x512xf32>
    %5 = arith.addf %2, %4 : vector<8x512xf32>
    %6 = arith.truncf %5 : vector<8x512xf32> to vector<8x512xbf16>
    %c0_5 = arith.constant 0 : index
    %c0_6 = arith.constant 0 : index
    %7 = vector.load %arg4[%c0_5, %c0_6] : memref<8x512xbf16, #tpu.memory_space<vmem>>, vector<8x512xbf16>
    tpu.vector_store %arg4[%c0_5, %c0_6], %6 {strides = array<i32>} : memref<8x512xbf16, #tpu.memory_space<vmem>>, vector<8x512xbf16>,
    return
  }
  func.func @transform_0(%arg0: i32) -> (i32, i32) {
    %c0_i32 = arith.constant 0 : i32
    %c0_i32_0 = arith.constant 0 : i32
    %c0_i32_1 = arith.constant 0 : i32
    return %c0_i32, %c0_i32_0 : i32, i32
  }
  func.func @transform_1(%arg0: i32) -> (i32, i32) {
    %c0_i32 = arith.constant 0 : i32
    %c0_i32_0 = arith.constant 0 : i32
    return %c0_i32, %arg0 : i32, i32
  }
  func.func @transform_2(%arg0: i32) -> (i32, i32) {
    %c0_i32 = arith.constant 0 : i32
    %c0_i32_0 = arith.constant 0 : i32
    %c0_i32_1 = arith.constant 0 : i32
    return %c0_i32, %c0_i32_0 : i32, i32
  }
  func.func @transform_3(%arg0: i32) -> (i32, i32) {
    %c0_i32 = arith.constant 0 : i32
    %c0_i32_0 = arith.constant 0 : i32
    return %c0_i32, %arg0 : i32, i32
  }
}

</mosaic_0001>

<llo_original>
// kernel: _matmul_bias_lanedense.1
$region0: #{_matmul_bias_lanedense.1}
  #allocation0 [shape = 'u32[]', space=smem, size = 0x4, offset = 0x4, fixed_abs, tag = 'smem constant byte address 0x4 - core index']
  #allocation1 [shape = 'u32[144,128]{1,0:T(1,128)}', space=vmem, size = 0x12000, scoped, tag = 'internal scratch']
  %s0 = inlined_call_operand.vmem [shape: bf16[8,36], index: 0, kind: input, shape index: {}]
  %s1 = inlined_call_operand.hbm [shape: bf16[36,512], index: 1, kind: input, shape index: {}]
  %s2 = inlined_call_operand.vmem [shape: f32[8,1], index: 2, kind: input, shape index: {}]
  %s3 = inlined_call_operand.hbm [shape: bf16[8,512], index: 3, kind: output, shape index: {}]
  %s4 = sld [smem:[#allocation0]]
  $region26: #{_matmul_bias_lanedense.1} parent=0
    _
  %s6 = ssub.s32 1, %s4
  %s7 = scalar_select 0, %s6, %s4
  $region1: #{_matmul_bias_lanedense.1} parent=0
    #allocation2 [shape = 'u8[40960]{0}', space=vmem, size = 0xa000, scoped, tag = 'input window, operand 1, single buffered']
    #allocation3 [shape = 's32[1]{0}', space=sflag, size = 0x4, scoped, tag = 'scoped memory for _matmul_bias_lanedense.1']
    #allocation4 [shape = 's32[1]{0}', space=sflag, size = 0x4, scoped, tag = 'scoped memory for _matmul_bias_lanedense.1']
    #allocation5 [shape = 'u8[8192]{0}', space=vmem, size = 0x2000, scoped, tag = 'output window, operand 0, single buffered']
    %8 = vsyncpa [#allocation3], 0
    %9 = vsyncpa [#allocation4], 0
    // Predicated region
    $region2: #{_matmul_bias_lanedense.1} parent=1 // pred_check
      _
    $region3: #{_matmul_bias_lanedense.1} parent=1 // pred_check_branch
      %11 = sbr.rel (0) target = $region5
    $region4: #{_matmul_bias_lanedense.1} parent=1 // pred_region
      _
    $region5: #{_matmul_bias_lanedense.1} parent=1 // pred_fallthru
      _
    // Predicated region
    $region6: #{_matmul_bias_lanedense.1} parent=1 // pred_check
      _
    $region7: #{_matmul_bias_lanedense.1} parent=1 // pred_check_branch
      %13 = sbr.rel (0) target = $region9
    $region8: #{_matmul_bias_lanedense.1} parent=1 // pred_region
      %s15 = ssub.s32 1280, 1280
      %16 = vsyncadd [#allocation3], %s15
      %s17 = sshll.u32 [#allocation2], 4
      %s18 = int_to_ptr.vmem [resolvable:$true] %s17
      %23 = dma.hbm_to_vmem [thread:$0]  %s1, 1280, %s18, [#allocation3], 256, 256, 16
    $region9: #{_matmul_bias_lanedense.1} parent=1 // pred_fallthru
      _
    // Predicated region
    $region10: #{_matmul_bias_lanedense.1} parent=1 // pred_check
      _
    $region11: #{_matmul_bias_lanedense.1} parent=1 // pred_check_branch
      %25 = sbr.rel (0) target = $region13
    $region12: #{_matmul_bias_lanedense.1} parent=1 // pred_region
      _
    $region13: #{_matmul_bias_lanedense.1} parent=1 // pred_fallthru
      _
    // Predicated region
    $region14: #{_matmul_bias_lanedense.1} parent=1 // pred_check
      _
    $region15: #{_matmul_bias_lanedense.1} parent=1 // pred_check_branch
      %27 = sbr.rel (0) target = $region17
    $region16: #{_matmul_bias_lanedense.1} parent=1 // pred_region
      %28 = dma.done [#allocation3], 1280
    $region17: #{_matmul_bias_lanedense.1} parent=1 // pred_fallthru
      _
    %v30 = vld [vmem:[%s0] sm:$0xf]
    %v31 = vld [vmem:[#allocation2] sm:$0xff]
    %v32 = vld [vmem:[#allocation2 + $0x8] sm:$0xff]
    %v33 = vld [vmem:[#allocation2 + $0x10] sm:$0xff]
    %v34 = vld [vmem:[#allocation2 + $0x18] sm:$0xff]
    %v35 = vld [vmem:[#allocation2 + $0x20] sm:$0xff]
    %v36 = vld [vmem:[#allocation2 + $0x28] sm:$0xff]
    %v37 = vld [vmem:[#allocation2 + $0x30] sm:$0xff]
    %v38 = vld [vmem:[#allocation2 + $0x38] sm:$0xff]
    %v39 = vld [vmem:[#allocation2 + $0x40] sm:$0x33]
    %v40 = vld [vmem:[#allocation2 + $0x48] sm:$0x33]
    %v41 = vld [vmem:[%s2] sm:$0xff]
    %43 = vset.pattern.permute.xlu0 0
    %44 = vperm.xlu0 %43, %v41
    %v45 = vpop.permute.xlu0 %44
    %v57 = vunpack.c.l.b16 %v31
    %v58 = vunpack.c.h.b16 %v31
    %v59 = vunpack.c.l.b16 %v32
    %v60 = vunpack.c.h.b16 %v32
    %v61 = vunpack.c.l.b16 %v33
    %v62 = vunpack.c.h.b16 %v33
    %v63 = vunpack.c.l.b16 %v34
    %v64 = vunpack.c.h.b16 %v34
    %v65 = vunpack.c.l.b16 %v35
    %v66 = vunpack.c.h.b16 %v35
    %v67 = vunpack.c.l.b16 %v36
    %v68 = vunpack.c.h.b16 %v36
    %v69 = vunpack.c.l.b16 %v37
    %v70 = vunpack.c.h.b16 %v37
    %v71 = vunpack.c.l.b16 %v38
    %v72 = vunpack.c.h.b16 %v38
    %v73 = vunpack.c.l.b16 %v39
    %v74 = vunpack.c.h.b16 %v39
    %v75 = vunpack.c.l.b16 %v40
    %v76 = vunpack.c.h.b16 %v40
    %v77 = vpack.c.b16 %v61, %v57
    %v78 = vpack.c.b16 %v62, %v58
    %v79 = vpack.c.b16 %v63, %v59
    %v80 = vpack.c.b16 %v64, %v60
    %v81 = vpack.c.b16 %v69, %v65
    %v82 = vpack.c.b16 %v70, %v66
    %v83 = vpack.c.b16 %v71, %v67
    %v84 = vpack.c.b16 %v72, %v68
    %v85 = vpack.c.b16 %v73, %v73
    %v86 = vpack.c.b16 %v74, %v74
    %v87 = vpack.c.b16 %v75, %v75
    %v88 = vpack.c.b16 %v76, %v76
    %vm97 = vcmask 293888
    %v99 = vsel %vm97, %v30, 0
    %vm101 = vcmask 1041408
    %v103 = vsel %vm101, %v85, 0
    %v106 = vsel %vm101, %v86, 0
    %v109 = vsel %vm101, %v87, 0
    %v112 = vsel %vm101, %v88, 0
    %114 = vmatprep.subr.bf16.mxu0 %v78
    %115 = vmatpush1.bf16.msra.mxu0 %v77
    %116 = vmatprep.subr.bf16.mxu0 %v82
    %117 = vmatpush1.bf16.msra.mxu0 %v81
    %118 = vmatprep.subr.bf16.mxu0 %v106
    %119 = vmatpush1.bf16.msra.mxu0 %v103
    %120 = vmatprep.subr.bf16.mxu0 0
    %121 = vmatpush1.bf16.msra.mxu0 0
    %122 = vmatprep.subr.bf16.mxu0 0
    %123 = vmatpush1.bf16.msra.mxu0 0
    %124 = vmatprep.subr.bf16.mxu0 0
    %125 = vmatpush1.bf16.msra.mxu0 0
    %126 = vmatprep.subr.bf16.mxu0 0
    %127 = vmatpush1.bf16.msra.mxu0 0
    %128 = vmatprep.subr.bf16.mxu0 0
    %129 = vmatpush1.bf16.msra.mxu0 0
    %130 = vmatprep.subr.bf16.mxu0 0
    %131 = vmatpush1.bf16.msra.mxu0 0
    %132 = vmatprep.subr.bf16.mxu0 0
    %133 = vmatpush1.bf16.msra.mxu0 0
    %134 = vmatprep.subr.bf16.mxu0 0
    %135 = vmatpush1.bf16.msra.mxu0 0
    %136 = vmatprep.subr.bf16.mxu0 0
    %137 = vmatpush1.bf16.msra.mxu0 0
    %138 = vmatprep.subr.bf16.mxu0 0
    %139 = vmatpush1.bf16.msra.mxu0 0
    %140 = vmatprep.subr.bf16.mxu0 0
    %141 = vmatpush1.bf16.msra.mxu0 0
    %142 = vmatprep.subr.bf16.mxu0 0
    %143 = vmatpush1.bf16.msra.mxu0 0
    %144 = vmatprep.subr.bf16.mxu0 0
    %145 = vmatpush1.bf16.msra.mxu0 0
    %146 = vmatprep.mubr.bf16.mxu0 0
    %147 = vmatmul.mubr.bf16.gmra.mrb[0].mxu0 %v99
    %v148 = vpop.f32.mrb[0].mxu0
    %v149 = vadd.f32 %v45, %v148
    %v150 = vpop.f32.mrb[0].mxu0
    %v151 = vadd.f32 %v45, %v150
    %v152 = vpop.f32.mrb[0].mxu0
    %v153 = vpop.f32.mrb[0].mxu0
    %154 = vdwg.mxu0
    %155 = vmatprep.subr.bf16.mxu0 %v80
    %156 = vmatpush1.bf16.msra.mxu0 %v79
    %157 = vmatprep.subr.bf16.mxu0 %v84
    %158 = vmatpush1.bf16.msra.mxu0 %v83
    %159 = vmatprep.subr.bf16.mxu0 %v112
    %160 = vmatpush1.bf16.msra.mxu0 %v109
    %161 = vmatprep.subr.bf16.mxu0 0
    %162 = vmatpush1.bf16.msra.mxu0 0
    %163 = vmatprep.subr.bf16.mxu0 0
    %164 = vmatpush1.bf16.msra.mxu0 0
    %165 = vmatprep.subr.bf16.mxu0 0
    %166 = vmatpush1.bf16.msra.mxu0 0
    %167 = vmatprep.subr.bf16.mxu0 0
    %168 = vmatpush1.bf16.msra.mxu0 0
    %169 = vmatprep.subr.bf16.mxu0 0
    %170 = vmatpush1.bf16.msra.mxu0 0
    %171 = vmatprep.subr.bf16.mxu0 0
    %172 = vmatpush1.bf16.msra.mxu0 0
    %173 = vmatprep.subr.bf16.mxu0 0
    %174 = vmatpush1.bf16.msra.mxu0 0
    %175 = vmatprep.subr.bf16.mxu0 0
    %176 = vmatpush1.bf16.msra.mxu0 0
    %177 = vmatprep.subr.bf16.mxu0 0
    %178 = vmatpush1.bf16.msra.mxu0 0
    %179 = vmatprep.subr.bf16.mxu0 0
    %180 = vmatpush1.bf16.msra.mxu0 0
    %181 = vmatprep.subr.bf16.mxu0 0
    %182 = vmatpush1.bf16.msra.mxu0 0
    %183 = vmatprep.subr.bf16.mxu0 0
    %184 = vmatpush1.bf16.msra.mxu0 0
    %185 = vmatprep.subr.bf16.mxu0 0
    %186 = vmatpush1.bf16.msra.mxu0 0
    %187 = vmatprep.mubr.bf16.mxu0 0
    %188 = vmatmul.mubr.bf16.gmra.mrb[0].mxu0 %v99
    %v189 = vpop.f32.mrb[0].mxu0
    %v190 = vadd.f32 %v45, %v189
    %v191 = vpop.f32.mrb[0].mxu0
    %v192 = vadd.f32 %v45, %v191
    %v193 = vpop.f32.mrb[0].mxu0
    %v194 = vpop.f32.mrb[0].mxu0
    %195 = vdwg.mxu0
    %v196 = vpack.c.bf16 %v149, %v149
    %v197 = vpack.c.bf16 %v151, %v151
    %v198 = vpack.c.bf16 %v190, %v190
    %v199 = vpack.c.bf16 %v192, %v192
    %v204 = vunpack.c.l.b16 %v196
    %v205 = vunpack.c.l.b16 %v197
    %v206 = vunpack.c.l.b16 %v198
    %v207 = vunpack.c.l.b16 %v199
    %v208 = vpack.c.b16 %v205, %v204
    %v209 = vpack.c.b16 %v207, %v206
    %212 = vst [vmem:[#allocation5] sm:$0xff] %v208
    %213 = vst [vmem:[#allocation5 + $0x8] sm:$0xff] %v209
    // Predicated region
    $region18: #{_matmul_bias_lanedense.1} parent=1 // pred_check
      _
    $region19: #{_matmul_bias_lanedense.1} parent=1 // pred_check_branch
      %215 = sbr.rel (0) target = $region21
    $region20: #{_matmul_bias_lanedense.1} parent=1 // pred_region
      %s217 = ssub.s32 256, 256
      %218 = vsyncadd [#allocation4], %s217
      %s220 = sshll.u32 [#allocation5], 4
      %s221 = int_to_ptr.vmem [resolvable:$true] %s220
      %223 = dma.vmem_to_hbm [thread:$0]  %s221, 256, %s3, [#allocation4]
    $region21: #{_matmul_bias_lanedense.1} parent=1 // pred_fallthru
      _
    // Predicated region
    $region22: #{_matmul_bias_lanedense.1} parent=1 // pred_check
      _
    $region23: #{_matmul_bias_lanedense.1} parent=1 // pred_check_branch
      %225 = sbr.rel (0) target = $region25
    $region24: #{_matmul_bias_lanedense.1} parent=1 // pred_region
      %226 = dma.done [#allocation4], 256
    $region25: #{_matmul_bias_lanedense.1} parent=1 // pred_fallthru
      _
    %227 = vsyncpa [#allocation3], 1
    %228 = vsyncpa [#allocation4], 1

</llo_original>
